<compile_context>
chip_gen: v6e
topology: v6e:2x2x1
jax: 0.10.0
libtpu: 0.0.40
codegen_flags: <defaults>
</compile_context>

<pallas_src>
import math

import jax
import jax.numpy as jnp
from jax.experimental import pallas as pl
from jax.experimental.pallas import tpu as pltpu


# ---------------------------------------------------------------------------
# Kernels
# ---------------------------------------------------------------------------
def _value_mm_kernel_weight_resident(x_ref, w_ref, o_ref):
    # 1-D grid over M. Whole (padded) weight is resident in VMEM; single dot.
    o_ref[...] = jnp.dot(
        x_ref[...], w_ref[...], preferred_element_type=jnp.float32
    ).astype(o_ref.dtype)


def _value_mm_kernel_f32out(x_ref, w_ref, o_ref):
    # 3-D grid, f32 output: accumulate directly into the resident output block.
    partial = jnp.dot(x_ref[...], w_ref[...], preferred_element_type=jnp.float32)

    @pl.when(pl.program_id(2) == 0)
    def _write():
        o_ref[...] = partial

    @pl.when(pl.program_id(2) != 0)
    def _accum():
        o_ref[...] += partial


def _value_mm_kernel_acc(x_ref, w_ref, o_ref, acc_ref):
    # 3-D grid, low-precision output: f32 scratch accumulator.
    k = pl.program_id(2)
    partial = jnp.dot(x_ref[...], w_ref[...], preferred_element_type=jnp.float32)

    @pl.when(k == 0)
    def _write():
        acc_ref[...] = partial

    @pl.when(k != 0)
    def _accum():
        acc_ref[...] += partial

    @pl.when(k == pl.num_programs(2) - 1)
    def _finalize():
        o_ref[...] = acc_ref[...].astype(o_ref.dtype)


# ---------------------------------------------------------------------------
# Host-side helpers
# ---------------------------------------------------------------------------
def _round_up(n, m):
    return ((n + m - 1) // m) * m


def _pick_tile(dim, target, base):
    """(tile, padded_dim): tile % base == 0 and padded_dim % tile == 0."""
    padded = _round_up(max(int(dim), 1), base)
    if padded <= target:
        return padded, padded
    return target, _round_up(padded, target)


def _pick_divisor_tile(padded, target, base):
    """Largest multiple of `base` that divides `padded` and is <= target."""
    padded = int(padded)
    if padded <= target:
        return padded
    best = base
    q = padded // base
    for d in range(1, q + 1):
        if q % d == 0 and base * d <= target:
            best = base * d
    return best


def _m_tile_base(compute_dtype):
    # Sublane packing: f32 -> 8 rows/vreg, bf16 -> 16, int8/fp8 -> 32.
    return max(8, 32 // jnp.dtype(compute_dtype).itemsize)


def _vmem_limit_bytes(working_set_bytes):
    """Per-generation VMEM request: generous on v5e/v6e, safe on v7x (64 MiB)."""
    cap = 64 * 1024 * 1024
    try:
        info = pltpu.get_tpu_info()
        cap = int(getattr(info, "vmem_capacity_bytes", cap)) or cap
    except Exception:
        pass
    hi = (cap * 3) // 4
    want = max(32 * 1024 * 1024, 2 * int(working_set_bytes) + (4 << 20))
    return max(min(hi, want), 16 * 1024 * 1024)


def prepare_weight(weight, *, compute_dtype=jnp.bfloat16):
    """One-time relayout of an nn.Linear weight (dim_val, dim_input).

    Transposes to (dim_input, dim_val), zero-pads both dims to multiples of
    128 and casts to `compute_dtype` (bf16 by default for MXU throughput;
    pass jnp.float32 for exact f32 semantics, or None to keep the input
    dtype). Do this once at parameter-init time, NOT per forward call.

    Returns (padded_weight, dim_input, dim_val).
    """
    w = jnp.asarray(weight)
    dim_val, dim_input = w.shape
    wt = w.T
    k_pad = _round_up(dim_input, 128)
    n_pad = _round_up(dim_val, 128)
    if (k_pad, n_pad) != (dim_input, dim_val):
        wt = jnp.pad(wt, ((0, k_pad - dim_input), (0, n_pad - dim_val)))
    if compute_dtype is not None:
        wt = wt.astype(compute_dtype)
    return wt, dim_input, dim_val


def value_forward(
    x,
    prepared_weight,
    *,
    tm=512,
    tn=256,
    tk=None,
    max_resident_weight_bytes=4 * 1024 * 1024,
    x_tile_bytes_budget=4 * 1024 * 1024,
    x_buffers=2,
):
    """Equivalent of Value.forward: x @ W.T.

    x:               (..., dim_input)
    prepared_weight: output of prepare_weight() -> (wt, dim_input, dim_val)
    x_buffers:       pipeline depth for the x input (sweepable; 2 = default).
    returns (..., dim_val), dtype == x.dtype
    """
    wt, dim_input, dim_val = prepared_weight
    k_pad, n_pad = wt.shape
    compute_dtype = wt.dtype
    itemsize = jnp.dtype(compute_dtype).itemsize
    out_dtype = x.dtype
    out_itemsize = jnp.dtype(out_dtype).itemsize

    lead_shape = x.shape[:-1]
    assert x.shape[-1] == dim_input, "last dim of x must equal dim_input"
    m = math.prod([int(s) for s in lead_shape]) if lead_shape else 1

    # Per-call work on x only: cast to compute dtype, pad K to the weight's K.
    x2d = x.reshape(m, dim_input).astype(compute_dtype)
    if k_pad != dim_input:
        x2d = jnp.pad(x2d, ((0, 0), (0, k_pad - dim_input)))

    m_base = _m_tile_base(compute_dtype)
    weight_bytes = k_pad * n_pad * itemsize

    if weight_bytes <= max_resident_weight_bytes:
        # ---------------- Weight-resident 1-D grid over M ----------------
        tm_target = tm
        while tm_target > m_base and tm_target * k_pad * itemsize > x_tile_bytes_budget:
            tm_target //= 2
        tm_, m_pad = _pick_tile(m, max(tm_target, m_base), m_base)
        # Give both v7x TensorCores work when M would be a single block.
        if m_pad // tm_ == 1 and tm_ % (2 * m_base) == 0:
            tm_ //= 2
        if m_pad != m:
            x2d = jnp.pad(x2d, ((0, m_pad - m), (0, 0)))

        grid = (m_pad // tm_,)
        x_spec_kwargs = {}
        if x_buffers != 2:
            x_spec_kwargs["pipeline_mode"] = pl.Buffered(x_buffers)
        in_specs = [
            pl.BlockSpec((tm_, k_pad), lambda i: (i, 0), **x_spec_kwargs),
            pl.BlockSpec((k_pad, n_pad), lambda i: (0, 0)),
        ]
        out_specs = pl.BlockSpec((tm_, n_pad), lambda i: (i, 0))
        kernel = _value_mm_kernel_weight_resident
        scratch_shapes = []
        dim_sem = ("parallel",)
        working_set = (
            2 * tm_ * k_pad * itemsize
            + 2 * weight_bytes
            + 2 * tm_ * n_pad * out_itemsize
        )
    else:
        # ---------------- General 3-D tiled matmul (K reduction) ---------
        if tk is None:
            tk = 1024 if itemsize <= 2 else 512
        tk_ = _pick_divisor_tile(k_pad, tk, 128)
        tn_ = _pick_divisor_tile(n_pad, tn, 128)
        tm_, m_pad = _pick_tile(m, tm, m_base)
        if m_pad // tm_ == 1 and tm_ % (2 * m_base) == 0:
            tm_ //= 2
        if m_pad != m:
            x2d = jnp.pad(x2d, ((0, m_pad - m), (0, 0)))

        grid = (m_pad // tm_, n_pad // tn_, k_pad // tk_)
        in_specs = [
            pl.BlockSpec((tm_, tk_), lambda i, j, k: (i, k)),
            pl.BlockSpec((tk_, tn_), lambda i, j, k: (k, j)),
        ]
        out_specs = pl.BlockSpec((tm_, tn_), lambda i, j, k: (i, j))
        if jnp.dtype(out_dtype) == jnp.dtype(jnp.float32):
            kernel = _value_mm_kernel_f32out
            scratch_shapes = []
            acc_bytes = 0
        else:
            kernel = _value_mm_kernel_acc
            scratch_shapes = [pltpu.VMEM((tm_, tn_), jnp.float32)]
            acc_bytes = tm_ * tn_ * 4
        dim_sem = ("parallel", "parallel", "arbitrary")
        working_set = (
            2 * tm_ * tk_ * itemsize
            + 2 * tk_ * tn_ * itemsize
            + 2 * tm_ * tn_ * out_itemsize
            + acc_bytes
        )

    cost = pl.CostEstimate(
        flops=2 * m * dim_input * dim_val,
        transcendentals=0,
        bytes_accessed=(
            m * dim_input * itemsize
            + dim_input * dim_val * itemsize
            + m * dim_val * out_itemsize
        ),
    )

    out_padded = pl.pallas_call(
        kernel,
        out_shape=jax.ShapeDtypeStruct((m_pad, n_pad), out_dtype),
        grid_spec=pltpu.PrefetchScalarGridSpec(
            num_scalar_prefetch=0,
            grid=grid,
            in_specs=in_specs,
            out_specs=out_specs,
            scratch_shapes=scratch_shapes,
        ),
        compiler_params=pltpu.CompilerParams(
            dimension_semantics=dim_sem,
            vmem_limit_bytes=_vmem_limit_bytes(working_set),
        ),
        cost_estimate=cost,
    )(x2d, wt)

    out2d = out_padded[:m, :dim_val]
    return out2d.reshape(*lead_shape, dim_val)


# TODO(synk): dim_val=64 pads N to 128 and wastes half the MXU columns/stores;
# fusing this V projection with the sibling Q/K projections (lane-dense output)
# is an op-granularity decision outside this module.


if __name__ == "__main__":
    # Small shapes consistent with the module: batch=2, seq=8, dim_input=32, dim_val=64
    batch, seq, dim_input, dim_val = 2, 8, 32, 64

    key = jax.random.PRNGKey(0)
    kx, kw = jax.random.split(key)

    x = jax.random.normal(kx, (batch, seq, dim_input), dtype=jnp.float32)
    # Deterministic nn.Linear-style init: uniform(-1/sqrt(fan_in), +1/sqrt(fan_in))
    bound = 1.0 / (dim_input ** 0.5)
    weight = jax.random.uniform(
        kw, (dim_val, dim_input), dtype=jnp.float32, minval=-bound, maxval=bound
    )

    ref = x @ weight.T

    # Default path: bf16 operands / f32 accumulation, weight-resident 1-D grid.
    w_bf16 = jax.tree_util.tree_map(jax.block_until_ready, prepare_weight(weight))
    out_bf16 = jax.block_until_ready(value_forward(x, w_bf16))
    assert out_bf16.shape == (batch, seq, dim_val)
    assert jnp.allclose(out_bf16, ref, atol=5e-2, rtol=5e-2)

    # Exact-f32 path (matches the PyTorch module semantics tightly).
    w_f32 = jax.tree_util.tree_map(
        jax.block_until_ready, prepare_weight(weight, compute_dtype=jnp.float32)
    )
    out_f32 = jax.block_until_ready(value_forward(x, w_f32))
    assert out_f32.shape == (batch, seq, dim_val)
    assert jnp.allclose(out_f32, ref, atol=1e-5, rtol=1e-5)

    # Exercise the general 3-D reduction path too (forced, same small shapes).
    out_3d = jax.block_until_ready(
        value_forward(x, w_bf16, max_resident_weight_bytes=0)
    )
    assert out_3d.shape == (batch, seq, dim_val)
    assert jnp.allclose(out_3d, ref, atol=5e-2, rtol=5e-2)

    print("KERNEL_OK")
</pallas_src>

<mosaic_0001>
module attributes {stable_mosaic.version = 11 : i64} {
  func.func @_value_mm_kernel_weight_resident(%arg0: i32, %arg1: memref<16x128xbf16, #tpu.memory_space<vmem>>, %arg2: memref<128x128xbf16, #tpu.memory_space<vmem>>, %arg3: memref<16x128xf32, #tpu.memory_space<vmem>>) attributes {dimension_semantics = [#tpu.dimension_semantics<parallel>], iteration_bounds = array<i64: 1>, scalar_prefetch = 0 : i64, scratch_operands = 0 : i64, tpu.core_type = #tpu.core_type<tc>, window_params = [{transform_indices = @transform_0, window_bounds = array<i64: 16, 128>}, {pipeline_mode = #tpu.pipeline_mode<synchronous>, transform_indices = @transform_1, window_bounds = array<i64: 128, 128>}, {transform_indices = @transform_2, window_bounds = array<i64: 16, 128>}]} {
    %c0 = arith.constant 0 : index
    %c0_0 = arith.constant 0 : index
    %0 = vector.load %arg1[%c0, %c0_0] : memref<16x128xbf16, #tpu.memory_space<vmem>>, vector<16x128xbf16>
    %c0_1 = arith.constant 0 : index
    %c0_2 = arith.constant 0 : index
    %1 = vector.load %arg2[%c0_1, %c0_2] : memref<128x128xbf16, #tpu.memory_space<vmem>>, vector<128x128xbf16>
    %cst = arith.constant dense<0.000000e+00> : vector<16x128xf32>
    %2 = tpu.matmul %0, %1, %cst {dimension_numbers = #tpu.dot_dimension_numbers<[1], [0], [0], [1], [0, 0, 1, 1], [], []>} : vector<16x128xbf16>, vector<128x128xbf16>, vector<16x128xf32> -> vector<16x128xf32>
    %c0_3 = arith.constant 0 : index
    %c0_4 = arith.constant 0 : index
    %3 = vector.load %arg3[%c0_3, %c0_4] : memref<16x128xf32, #tpu.memory_space<vmem>>, vector<16x128xf32>
    tpu.vector_store %arg3[%c0_3, %c0_4], %2 {strides = array<i32>} : memref<16x128xf32, #tpu.memory_space<vmem>>, vector<16x128xf32>,
    return
  }
  func.func @transform_0(%arg0: i32) -> (i32, i32) {
    %c0_i32 = arith.constant 0 : i32
    %c0_i32_0 = arith.constant 0 : i32
    return %arg0, %c0_i32 : i32, i32
  }
  func.func @transform_1(%arg0: i32) -> (i32, i32) {
    %c0_i32 = arith.constant 0 : i32
    %c0_i32_0 = arith.constant 0 : i32
    %c0_i32_1 = arith.constant 0 : i32
    return %c0_i32, %c0_i32_0 : i32, i32
  }
  func.func @transform_2(%arg0: i32) -> (i32, i32) {
    %c0_i32 = arith.constant 0 : i32
    %c0_i32_0 = arith.constant 0 : i32
    return %arg0, %c0_i32 : i32, i32
  }
}

</mosaic_0001>

<llo_original>
// kernel: tpu_custom_call.1
$region0: #{tpu_custom_call.1}
  #allocation0 [shape = 'u32[]', space=smem, size = 0x4, offset = 0x4, fixed_abs, tag = 'smem constant byte address 0x4 - core index']
  #allocation1 [shape = 'u32[144,128]{1,0:T(1,128)}', space=vmem, size = 0x12000, scoped, tag = 'internal scratch']
  %s0 = inlined_call_operand.hbm [shape: bf16[16,128], index: 0, kind: input, shape index: {}]
  %s1 = inlined_call_operand.hbm [shape: bf16[128,128], index: 1, kind: input, shape index: {}]
  %s2 = inlined_call_operand.hbm [shape: f32[16,128], index: 2, kind: output, shape index: {}]
  %s3 = sld [smem:[#allocation0]]
  $region26: #{tpu_custom_call.1} parent=0
    _
  %s5 = ssub.s32 1, %s3
  %s6 = scalar_select 0, %s5, %s3
  $region1: #{tpu_custom_call.1} parent=0
    #allocation2 [shape = 'u8[4096]{0}', space=vmem, size = 0x1000, scoped, tag = 'input window, operand 0, single buffered']
    #allocation3 [shape = 's32[1]{0}', space=sflag, size = 0x4, scoped, tag = 'scoped memory for tpu_custom_call.1']
    #allocation4 [shape = 's32[1]{0}', space=sflag, size = 0x4, scoped, tag = 'scoped memory for tpu_custom_call.1']
    #allocation5 [shape = 'u8[32768]{0}', space=vmem, size = 0x8000, scoped, tag = 'input window, operand 1, single buffered']
    #allocation6 [shape = 's32[1]{0}', space=sflag, size = 0x4, scoped, tag = 'scoped memory for tpu_custom_call.1']
    #allocation7 [shape = 'u8[8192]{0}', space=vmem, size = 0x2000, scoped, tag = 'output window, operand 0, single buffered']
    %7 = vsyncpa [#allocation3], 0
    %8 = vsyncpa [#allocation6], 0
    %9 = vsyncpa [#allocation4], 0
    // Predicated region
    $region2: #{tpu_custom_call.1} parent=1 // pred_check
      _
    $region3: #{tpu_custom_call.1} parent=1 // pred_check_branch
      %11 = sbr.rel (0) target = $region5
    $region4: #{tpu_custom_call.1} parent=1 // pred_region
      %s13 = ssub.s32 128, 128
      %14 = vsyncadd [#allocation3], %s13
      %s15 = sshll.u32 [#allocation2], 4
      %s16 = int_to_ptr.vmem [resolvable:$true] %s15
      %21 = dma.hbm_to_vmem [thread:$0]  %s0, 128, %s16, [#allocation3], 64, 64, 4
    $region5: #{tpu_custom_call.1} parent=1 // pred_fallthru
      _
    // Predicated region
    $region6: #{tpu_custom_call.1} parent=1 // pred_check
      _
    $region7: #{tpu_custom_call.1} parent=1 // pred_check_branch
      %23 = sbr.rel (0) target = $region9
    $region8: #{tpu_custom_call.1} parent=1 // pred_region
      %s25 = ssub.s32 1024, 1024
      %26 = vsyncadd [#allocation6], %s25
      %s27 = sshll.u32 [#allocation5], 4
      %s28 = int_to_ptr.vmem [resolvable:$true] %s27
      %33 = dma.hbm_to_vmem [thread:$0]  %s1, 1024, %s28, [#allocation6], 64, 64, 4
    $region9: #{tpu_custom_call.1} parent=1 // pred_fallthru
      _
    // Predicated region
    $region10: #{tpu_custom_call.1} parent=1 // pred_check
      _
    $region11: #{tpu_custom_call.1} parent=1 // pred_check_branch
      %35 = sbr.rel (0) target = $region13
    $region12: #{tpu_custom_call.1} parent=1 // pred_region
      %36 = dma.done [#allocation3], 128
    $region13: #{tpu_custom_call.1} parent=1 // pred_fallthru
      _
    // Predicated region
    $region14: #{tpu_custom_call.1} parent=1 // pred_check
      _
    $region15: #{tpu_custom_call.1} parent=1 // pred_check_branch
      %38 = sbr.rel (0) target = $region17
    $region16: #{tpu_custom_call.1} parent=1 // pred_region
      %39 = dma.done [#allocation6], 1024
    $region17: #{tpu_custom_call.1} parent=1 // pred_fallthru
      _
    %v41 = vld [vmem:[#allocation2] sm:$0xf]
    %v42 = vld [vmem:[#allocation2 + $0x4] sm:$0xf]
    %v43 = vld [vmem:[#allocation5] sm:$0xf]
    %v44 = vld [vmem:[#allocation5 + $0x4] sm:$0xf]
    %v45 = vld [vmem:[#allocation5 + $0x8] sm:$0xf]
    %v46 = vld [vmem:[#allocation5 + $0xc] sm:$0xf]
    %v47 = vld [vmem:[#allocation5 + $0x10] sm:$0xf]
    %v48 = vld [vmem:[#allocation5 + $0x14] sm:$0xf]
    %v49 = vld [vmem:[#allocation5 + $0x18] sm:$0xf]
    %v50 = vld [vmem:[#allocation5 + $0x1c] sm:$0xf]
    %v51 = vld [vmem:[#allocation5 + $0x20] sm:$0xf]
    %v52 = vld [vmem:[#allocation5 + $0x24] sm:$0xf]
    %v53 = vld [vmem:[#allocation5 + $0x28] sm:$0xf]
    %v54 = vld [vmem:[#allocation5 + $0x2c] sm:$0xf]
    %v55 = vld [vmem:[#allocation5 + $0x30] sm:$0xf]
    %v56 = vld [vmem:[#allocation5 + $0x34] sm:$0xf]
    %v57 = vld [vmem:[#allocation5 + $0x38] sm:$0xf]
    %v58 = vld [vmem:[#allocation5 + $0x3c] sm:$0xf]
    %v61 = vunpack.c.l.b16 %v41
    %v62 = vunpack.c.l.b16 %v42
    %v63 = vpack.c.b16 %v62, %v61
    %v81 = vunpack.c.l.b16 %v43
    %v82 = vunpack.c.l.b16 %v44
    %v83 = vunpack.c.l.b16 %v45
    %v84 = vunpack.c.l.b16 %v46
    %v85 = vunpack.c.l.b16 %v47
    %v86 = vunpack.c.l.b16 %v48
    %v87 = vunpack.c.l.b16 %v49
    %v88 = vunpack.c.l.b16 %v50
    %v89 = vunpack.c.l.b16 %v51
    %v90 = vunpack.c.l.b16 %v52
    %v91 = vunpack.c.l.b16 %v53
    %v92 = vunpack.c.l.b16 %v54
    %v93 = vunpack.c.l.b16 %v55
    %v94 = vunpack.c.l.b16 %v56
    %v95 = vunpack.c.l.b16 %v57
    %v96 = vunpack.c.l.b16 %v58
    %v97 = vpack.c.b16 %v82, %v81
    %v98 = vpack.c.b16 %v84, %v83
    %v99 = vpack.c.b16 %v86, %v85
    %v100 = vpack.c.b16 %v88, %v87
    %v101 = vpack.c.b16 %v90, %v89
    %v102 = vpack.c.b16 %v92, %v91
    %v103 = vpack.c.b16 %v94, %v93
    %v104 = vpack.c.b16 %v96, %v95
    %113 = vmatprep.subr.bf16.mxu0 0
    %114 = vmatpush1.bf16.msra.mxu0 %v104
    %115 = vmatprep.subr.bf16.mxu0 0
    %116 = vmatpush1.bf16.msra.mxu0 %v103
    %117 = vmatprep.subr.bf16.mxu0 0
    %118 = vmatpush1.bf16.msra.mxu0 %v102
    %119 = vmatprep.subr.bf16.mxu0 0
    %120 = vmatpush1.bf16.msra.mxu0 %v101
    %121 = vmatprep.subr.bf16.mxu0 0
    %122 = vmatpush1.bf16.msra.mxu0 %v100
    %123 = vmatprep.subr.bf16.mxu0 0
    %124 = vmatpush1.bf16.msra.mxu0 %v99
    %125 = vmatprep.subr.bf16.mxu0 0
    %126 = vmatpush1.bf16.msra.mxu0 %v98
    %127 = vmatprep.subr.bf16.mxu0 0
    %128 = vmatpush1.bf16.msra.mxu0 %v97
    %129 = vmatprep.subr.bf16.mxu0 0
    %130 = vmatpush2.bf16.msra.mxu0 0
    %131 = vmatprep.subr.bf16.mxu0 0
    %132 = vmatpush2.bf16.msra.mxu0 0
    %133 = vmatprep.subr.bf16.mxu0 0
    %134 = vmatpush2.bf16.msra.mxu0 0
    %135 = vmatprep.subr.bf16.mxu0 0
    %136 = vmatpush2.bf16.msra.mxu0 0
    %137 = vmatprep.subr.bf16.mxu0 0
    %138 = vmatpush2.bf16.msra.mxu0 0
    %139 = vmatprep.subr.bf16.mxu0 0
    %140 = vmatpush2.bf16.msra.mxu0 0
    %141 = vmatprep.subr.bf16.mxu0 0
    %142 = vmatpush2.bf16.msra.mxu0 0
    %143 = vmatprep.subr.bf16.mxu0 0
    %144 = vmatpush2.bf16.msra.mxu0 0
    %145 = vmatprep.mubr.bf16.mxu0 0
    %146 = vmatmul.mubr.bf16.gmra.mxu0 %v63
    %v147 = vpop.f32.mrf.mxu0
    %v148 = vadd.f32 0.0, %v147
    %v149 = vpop.f32.mrf.mxu0
    %v150 = vpop.f32.mrf.mxu0
    %v151 = vadd.f32 0.0, %v150
    %v152 = vpop.f32.mrf.mxu0
    %153 = vdwg.mxu0
    %154 = vst [vmem:[#allocation7] sm:$0xff] %v148
    %155 = vst [vmem:[#allocation7 + $0x8] sm:$0xff] %v151
    // Predicated region
    $region18: #{tpu_custom_call.1} parent=1 // pred_check
      _
    $region19: #{tpu_custom_call.1} parent=1 // pred_check_branch
      %157 = sbr.rel (0) target = $region21
    $region20: #{tpu_custom_call.1} parent=1 // pred_region
      %s159 = ssub.s32 256, 256
      %160 = vsyncadd [#allocation4], %s159
      %s161 = sshll.u32 [#allocation7], 4
      %s162 = int_to_ptr.vmem [resolvable:$true] %s161
      %167 = dma.vmem_to_hbm [thread:$0]  %s162, 256, %s2, [#allocation4], 128, 128, 8
    $region21: #{tpu_custom_call.1} parent=1 // pred_fallthru
      _
    // Predicated region
    $region22: #{tpu_custom_call.1} parent=1 // pred_check
      _
    $region23: #{tpu_custom_call.1} parent=1 // pred_check_branch
      %169 = sbr.rel (0) target = $region25
    $region24: #{tpu_custom_call.1} parent=1 // pred_region
      %170 = dma.done [#allocation4], 256
    $region25: #{tpu_custom_call.1} parent=1 // pred_fallthru
      _
    %171 = vsyncpa [#allocation3], 1
    %172 = vsyncpa [#allocation6], 1
    %173 = vsyncpa [#allocation4], 1

</llo_original>
